<compile_context>
chip_gen: v7x
topology: tpu7x:2x2x1
jax: 0.10.0
libtpu: 0.0.40
codegen_flags: <defaults>
</compile_context>

<pallas_src>
import functools

import jax
import jax.numpy as jnp
from jax.experimental import pallas as pl
from jax.experimental.pallas import tpu as pltpu


def _round_up(x, m):
    return ((x + m - 1) // m) * m


# ---------------- pass 1: msg = X @ W_msg,  xw = X @ W_upd_x  (bf16 MXU, f32 acc) ---
def _msg_xw_kernel(x_ref, wm_ref, wux_ref, msg_ref, xw_ref):
    x = x_ref[...]
    msg = jnp.dot(x, wm_ref[...], preferred_element_type=jnp.float32)
    msg_ref[...] = msg.astype(msg_ref.dtype)
    xw = jnp.dot(x, wux_ref[...], preferred_element_type=jnp.float32)
    xw_ref[...] = xw.astype(xw_ref.dtype)


# ------ pass 2: agg = A_bin @ msg (tiled reduction);  out = relu(xw + agg @ wu_agg) --
def _agg_update_kernel(a_ref, msg_ref, xw_ref, wua_ref, o_ref, acc_ref,
                       *, resident_msg, t):
    k = pl.program_id(1)

    @pl.when(k == 0)
    def _():
        acc_ref[...] = jnp.zeros_like(acc_ref)

    # int8 (0/1) -> bf16 cast is exact and runs on the VPU (free slack here).
    a = a_ref[...].astype(jnp.bfloat16)
    if resident_msg:
        m = msg_ref[pl.ds(pl.multiple_of(k * t, 128), t), :]
    else:
        m = msg_ref[...]
    acc_ref[...] += jnp.dot(a, m, preferred_element_type=jnp.float32)

    @pl.when(k == pl.num_programs(1) - 1)
    def _():
        upd = xw_ref[...] + jnp.dot(acc_ref[...].astype(jnp.bfloat16), wua_ref[...],
                                    preferred_element_type=jnp.float32)
        o_ref[...] = jnp.maximum(upd, 0.0).astype(o_ref.dtype)


def gnn_layer(node_features, adj_matrix, message_weight, update_weight, *, tile=512):
    """One GNNLayer forward via two tiled Pallas calls. Returns f32 [N, Dout]."""
    assert tile % 128 == 0, "tile must be a multiple of 128"
    n, din = node_features.shape
    dout = message_weight.shape[1]

    # lane-dense padded sizes
    din_p = _round_up(din, 128)
    dout_p = _round_up(dout, 128)
    t = min(tile, _round_up(n, 128))         # row / reduction tile (multiple of 128)
    n_p = _round_up(n, t)

    cdt = jnp.bfloat16  # MXU operand dtype (accumulation stays f32)

    # One-time prep (outside the per-layer kernels): binarize + pad + cast.
    x_p = jnp.zeros((n_p, din_p), cdt).at[:n, :din].set(node_features.astype(cdt))
    a_p = jnp.zeros((n_p, n_p), jnp.int8).at[:n, :n].set(
        (adj_matrix != 0).astype(jnp.int8))
    wm_p = jnp.zeros((din_p, dout_p), cdt).at[:din, :dout].set(
        message_weight.astype(cdt))
    # split update weight: rows [0:din) act on X, rows [din:) act on agg
    wux_p = jnp.zeros((din_p, dout_p), cdt).at[:din, :dout].set(
        update_weight[:din].astype(cdt))
    wua_p = jnp.zeros((dout_p, dout_p), cdt).at[:dout, :dout].set(
        update_weight[din:].astype(cdt))

    # ---- pass 1: messages + xw = X @ wu_x for every node, tiled over rows ----------
    msg, xw = pl.pallas_call(
        _msg_xw_kernel,
        out_shape=(jax.ShapeDtypeStruct((n_p, dout_p), cdt),       # msg (bf16)
                   jax.ShapeDtypeStruct((n_p, dout_p), jnp.float32)),  # xw (f32)
        grid=(n_p // t,),
        in_specs=[pl.BlockSpec((t, din_p), lambda i: (i, 0)),
                  pl.BlockSpec((din_p, dout_p), lambda i: (0, 0)),
                  pl.BlockSpec((din_p, dout_p), lambda i: (0, 0))],
        out_specs=(pl.BlockSpec((t, dout_p), lambda i: (i, 0)),
                   pl.BlockSpec((t, dout_p), lambda i: (i, 0))),
        compiler_params=pltpu.CompilerParams(
            dimension_semantics=("parallel",),
            vmem_limit_bytes=32 << 20),
    )(x_p, wm_p, wux_p)

    # ---- pass 2: tiled A @ msg with f32 accumulator + fused update/ReLU ------------
    # Keep the whole msg slab VMEM-resident when it is small (<= 8 MiB bf16);
    # with double buffering + A/xw/out/acc this stays well under v7x's 64 MiB.
    resident_msg = (n_p * dout_p * 2) <= (8 << 20)
    if resident_msg:
        msg_spec = pl.BlockSpec((n_p, dout_p), lambda i, k: (0, 0))
    else:
        msg_spec = pl.BlockSpec((t, dout_p), lambda i, k: (k, 0))

    kernel = functools.partial(_agg_update_kernel, resident_msg=resident_msg, t=t)

    out_p = pl.pallas_call(
        kernel,
        out_shape=jax.ShapeDtypeStruct((n_p, dout_p), jnp.float32),
        grid=(n_p // t, n_p // t),
        in_specs=[pl.BlockSpec((t, t), lambda i, k: (i, k)),          # A_bin (int8)
                  msg_spec,                                           # msg
                  pl.BlockSpec((t, dout_p), lambda i, k: (i, 0)),     # xw tile
                  pl.BlockSpec((dout_p, dout_p), lambda i, k: (0, 0))],  # wu_agg
        out_specs=pl.BlockSpec((t, dout_p), lambda i, k: (i, 0)),
        scratch_shapes=[pltpu.VMEM((t, dout_p), jnp.float32)],
        compiler_params=pltpu.CompilerParams(
            dimension_semantics=("parallel", "arbitrary"),
            vmem_limit_bytes=48 << 20),
    )(a_p, msg, xw, wua_p)

    return out_p[:n, :dout]


def gnn_layer_ref(x, adj, w_msg, w_upd):
    """Pure-JAX f32 reference of the exact per-node PyTorch semantics."""
    a = (adj != 0).astype(jnp.float32)
    msg = x @ w_msg
    agg = a @ msg
    upd = jnp.concatenate([x, agg], axis=1) @ w_upd
    return jnp.maximum(upd, 0.0)


if __name__ == "__main__":
    key = jax.random.PRNGKey(0)
    num_nodes, input_dim, output_dim = 8, 16, 32

    key, kx, ka, km, ku = jax.random.split(key, 5)
    node_features = jax.random.normal(kx, (num_nodes, input_dim), jnp.float32)
    adj = (jax.random.uniform(ka, (num_nodes, num_nodes)) < 0.4).astype(jnp.float32)
    adj = adj * (1.0 - jnp.eye(num_nodes))  # no self-loops

    # torch.randn-style parameter init (matches the nn.Parameter init in the spec)
    message_weight = jax.random.normal(km, (input_dim, output_dim), jnp.float32)
    update_weight = jax.random.normal(
        ku, (input_dim + output_dim, output_dim), jnp.float32)

    out = gnn_layer(node_features, adj, message_weight, update_weight)
    out = jax.block_until_ready(out)

    ref = gnn_layer_ref(node_features, adj, message_weight, update_weight)
    assert out.shape == (num_nodes, output_dim)

    # bf16 MXU operands (f32 accumulation) => compare with a magnitude-relative
    # max-error bound; a semantic bug would produce errors of order the values.
    err = float(jnp.max(jnp.abs(out - ref)))
    scale = float(jnp.max(jnp.abs(ref))) + 1e-6
    assert err / scale < 5e-2, (err, scale)

    print("KERNEL_OK")
</pallas_src>

<mosaic_0001>
module attributes {stable_mosaic.version = 11 : i64} {
  func.func @_msg_xw_kernel(%arg0: i32, %arg1: memref<128x128xbf16, #tpu.memory_space<vmem>>, %arg2: memref<128x128xbf16, #tpu.memory_space<vmem>>, %arg3: memref<128x128xbf16, #tpu.memory_space<vmem>>, %arg4: memref<128x128xbf16, #tpu.memory_space<vmem>>, %arg5: memref<128x128xf32, #tpu.memory_space<vmem>>) attributes {dimension_semantics = [#tpu.dimension_semantics<parallel>], iteration_bounds = array<i64: 1>, scalar_prefetch = 0 : i64, scratch_operands = 0 : i64, tpu.core_type = #tpu.core_type<tc>, window_params = [{transform_indices = @transform_0, window_bounds = array<i64: 128, 128>}, {pipeline_mode = #tpu.pipeline_mode<synchronous>, transform_indices = @transform_1, window_bounds = array<i64: 128, 128>}, {pipeline_mode = #tpu.pipeline_mode<synchronous>, transform_indices = @transform_2, window_bounds = array<i64: 128, 128>}, {transform_indices = @transform_3, window_bounds = array<i64: 128, 128>}, {transform_indices = @transform_4, window_bounds = array<i64: 128, 128>}]} {
    %c0 = arith.constant 0 : index
    %c0_0 = arith.constant 0 : index
    %0 = vector.load %arg1[%c0, %c0_0] : memref<128x128xbf16, #tpu.memory_space<vmem>>, vector<128x128xbf16>
    %c0_1 = arith.constant 0 : index
    %c0_2 = arith.constant 0 : index
    %1 = vector.load %arg2[%c0_1, %c0_2] : memref<128x128xbf16, #tpu.memory_space<vmem>>, vector<128x128xbf16>
    %cst = arith.constant dense<0.000000e+00> : vector<128x128xf32>
    %2 = tpu.matmul %0, %1, %cst {dimension_numbers = #tpu.dot_dimension_numbers<[1], [0], [0], [1], [0, 0, 1, 1], [], []>} : vector<128x128xbf16>, vector<128x128xbf16>, vector<128x128xf32> -> vector<128x128xf32>
    %3 = arith.truncf %2 : vector<128x128xf32> to vector<128x128xbf16>
    %c0_3 = arith.constant 0 : index
    %c0_4 = arith.constant 0 : index
    %4 = vector.load %arg4[%c0_3, %c0_4] : memref<128x128xbf16, #tpu.memory_space<vmem>>, vector<128x128xbf16>
    tpu.vector_store %arg4[%c0_3, %c0_4], %3 {strides = array<i32>} : memref<128x128xbf16, #tpu.memory_space<vmem>>, vector<128x128xbf16>,
    %c0_5 = arith.constant 0 : index
    %c0_6 = arith.constant 0 : index
    %5 = vector.load %arg3[%c0_5, %c0_6] : memref<128x128xbf16, #tpu.memory_space<vmem>>, vector<128x128xbf16>
    %cst_7 = arith.constant dense<0.000000e+00> : vector<128x128xf32>
    %6 = tpu.matmul %0, %5, %cst_7 {dimension_numbers = #tpu.dot_dimension_numbers<[1], [0], [0], [1], [0, 0, 1, 1], [], []>} : vector<128x128xbf16>, vector<128x128xbf16>, vector<128x128xf32> -> vector<128x128xf32>
    %c0_8 = arith.constant 0 : index
    %c0_9 = arith.constant 0 : index
    %7 = vector.load %arg5[%c0_8, %c0_9] : memref<128x128xf32, #tpu.memory_space<vmem>>, vector<128x128xf32>
    tpu.vector_store %arg5[%c0_8, %c0_9], %6 {strides = array<i32>} : memref<128x128xf32, #tpu.memory_space<vmem>>, vector<128x128xf32>,
    return
  }
  func.func @transform_0(%arg0: i32) -> (i32, i32) {
    %c0_i32 = arith.constant 0 : i32
    %c0_i32_0 = arith.constant 0 : i32
    return %arg0, %c0_i32 : i32, i32
  }
  func.func @transform_1(%arg0: i32) -> (i32, i32) {
    %c0_i32 = arith.constant 0 : i32
    %c0_i32_0 = arith.constant 0 : i32
    %c0_i32_1 = arith.constant 0 : i32
    return %c0_i32, %c0_i32_0 : i32, i32
  }
  func.func @transform_2(%arg0: i32) -> (i32, i32) {
    %c0_i32 = arith.constant 0 : i32
    %c0_i32_0 = arith.constant 0 : i32
    %c0_i32_1 = arith.constant 0 : i32
    return %c0_i32, %c0_i32_0 : i32, i32
  }
  func.func @transform_3(%arg0: i32) -> (i32, i32) {
    %c0_i32 = arith.constant 0 : i32
    %c0_i32_0 = arith.constant 0 : i32
    return %arg0, %c0_i32 : i32, i32
  }
  func.func @transform_4(%arg0: i32) -> (i32, i32) {
    %c0_i32 = arith.constant 0 : i32
    %c0_i32_0 = arith.constant 0 : i32
    return %arg0, %c0_i32 : i32, i32
  }
}

</mosaic_0001>

<llo_original>
// kernel: tpu_custom_call.1
$region0: #{tpu_custom_call.1}
  #allocation0 [shape = 'u32[]', space=smem, size = 0x4, offset = 0x4, fixed_abs, tag = 'smem constant byte address 0x4 - core index']
  #allocation1 [shape = 'u32[144,128]{1,0:T(1,128)}', space=vmem, size = 0x12000, scoped, tag = 'internal scratch']
  %s0 = inlined_call_operand.hbm [shape: bf16[128,128], index: 0, kind: input, shape index: {}]
  %s1 = inlined_call_operand.hbm [shape: bf16[128,128], index: 1, kind: input, shape index: {}]
  %s2 = inlined_call_operand.hbm [shape: bf16[128,128], index: 2, kind: input, shape index: {}]
  %s3 = inlined_call_operand.hbm [shape: bf16[128,128], index: 3, kind: output, shape index: {0}]
  %s4 = inlined_call_operand.hbm [shape: f32[128,128], index: 4, kind: output, shape index: {1}]
  %5 = xla_tuple %s3, %s4
  %s6 = sld [smem:[#allocation0]]
  $region42: #{tpu_custom_call.1} parent=0
    _
  %s8 = ssub.s32 1, %s6
  %s9 = scalar_select 0, %s8, %s6
  $region1: #{tpu_custom_call.1} parent=0
    #allocation2 [shape = 'u8[32768]{0}', space=vmem, size = 0x8000, scoped, tag = 'input window, operand 0, single buffered']
    #allocation3 [shape = 's32[1]{0}', space=sflag, size = 0x4, scoped, tag = 'scoped memory for tpu_custom_call.1']
    #allocation4 [shape = 's32[1]{0}', space=sflag, size = 0x4, scoped, tag = 'scoped memory for tpu_custom_call.1']
    #allocation5 [shape = 'u8[32768]{0}', space=vmem, size = 0x8000, scoped, tag = 'input window, operand 1, single buffered']
    #allocation6 [shape = 's32[1]{0}', space=sflag, size = 0x4, scoped, tag = 'scoped memory for tpu_custom_call.1']
    #allocation7 [shape = 'u8[32768]{0}', space=vmem, size = 0x8000, scoped, tag = 'input window, operand 2, single buffered']
    #allocation8 [shape = 'u8[32768]{0}', space=vmem, size = 0x8000, scoped, tag = 'output window, operand 0, single buffered']
    #allocation9 [shape = 'u8[65536]{0}', space=vmem, size = 0x10000, scoped, tag = 'output window, operand 1, single buffered']
    #allocation10 [shape = 's32[1]{0}', space=sflag, size = 0x4, scoped, tag = 'scoped memory for tpu_custom_call.1']
    %10 = vsyncpa [#allocation3], 0
    %11 = vsyncpa [#allocation6], 0
    %12 = vsyncpa [#allocation4], 0
    %13 = vsyncpa [#allocation10], 0
    // Predicated region
    $region2: #{tpu_custom_call.1} parent=1 // pred_check
      _
    $region3: #{tpu_custom_call.1} parent=1 // pred_check_branch
      %15 = sbr.rel (0) target = $region5
    $region4: #{tpu_custom_call.1} parent=1 // pred_region
      %s17 = ssub.s32 1024, 1024
      %18 = vsyncadd [#allocation3], %s17
      %s19 = sshll.u32 [#allocation2], 4
      %s20 = int_to_ptr.vmem [resolvable:$true] %s19
      %25 = dma.hbm_to_vmem [thread:$0]  %s0, 1024, %s20, [#allocation3], 64, 64, 4
    $region5: #{tpu_custom_call.1} parent=1 // pred_fallthru
      _
    // Predicated region
    $region6: #{tpu_custom_call.1} parent=1 // pred_check
      _
    $region7: #{tpu_custom_call.1} parent=1 // pred_check_branch
      %27 = sbr.rel (0) target = $region9
    $region8: #{tpu_custom_call.1} parent=1 // pred_region
      %s29 = ssub.s32 1024, 1024
      %30 = vsyncadd [#allocation6], %s29
      %s31 = sshll.u32 [#allocation5], 4
      %s32 = int_to_ptr.vmem [resolvable:$true] %s31
      %37 = dma.hbm_to_vmem [thread:$0]  %s1, 1024, %s32, [#allocation6], 64, 64, 4
    $region9: #{tpu_custom_call.1} parent=1 // pred_fallthru
      _
    // Predicated region
    $region10: #{tpu_custom_call.1} parent=1 // pred_check
      _
    $region11: #{tpu_custom_call.1} parent=1 // pred_check_branch
      %39 = sbr.rel (0) target = $region13
    $region12: #{tpu_custom_call.1} parent=1 // pred_region
      %s41 = ssub.s32 1024, 1024
      %42 = vsyncadd [#allocation6], %s41
      %s43 = sshll.u32 [#allocation7], 4
      %s44 = int_to_ptr.vmem [resolvable:$true] %s43
      %49 = dma.hbm_to_vmem [thread:$0]  %s2, 1024, %s44, [#allocation6], 64, 64, 4
    $region13: #{tpu_custom_call.1} parent=1 // pred_fallthru
      _
    // Predicated region
    $region14: #{tpu_custom_call.1} parent=1 // pred_check
      _
    $region15: #{tpu_custom_call.1} parent=1 // pred_check_branch
      %51 = sbr.rel (0) target = $region17
    $region16: #{tpu_custom_call.1} parent=1 // pred_region
      %52 = dma.done [#allocation3], 1024
    $region17: #{tpu_custom_call.1} parent=1 // pred_fallthru
      _
    // Predicated region
    $region18: #{tpu_custom_call.1} parent=1 // pred_check
      _
    $region19: #{tpu_custom_call.1} parent=1 // pred_check_branch
      %54 = sbr.rel (0) target = $region21
    $region20: #{tpu_custom_call.1} parent=1 // pred_region
      %55 = dma.done [#allocation6], 1024
    $region21: #{tpu_custom_call.1} parent=1 // pred_fallthru
      _
    // Predicated region
    $region22: #{tpu_custom_call.1} parent=1 // pred_check
      _
    $region23: #{tpu_custom_call.1} parent=1 // pred_check_branch
      %57 = sbr.rel (0) target = $region25
    $region24: #{tpu_custom_call.1} parent=1 // pred_region
      %58 = dma.done [#allocation6], 1024
    $region25: #{tpu_custom_call.1} parent=1 // pred_fallthru
      _
    %v60 = vld [vmem:[#allocation2] sm:$0xf]
    %v61 = vld [vmem:[#allocation2 + $0x4] sm:$0xf]
    %v62 = vld [vmem:[#allocation2 + $0x8] sm:$0xf]
    %v63 = vld [vmem:[#allocation2 + $0xc] sm:$0xf]
    %v64 = vld [vmem:[#allocation2 + $0x10] sm:$0xf]
    %v65 = vld [vmem:[#allocation2 + $0x14] sm:$0xf]
    %v66 = vld [vmem:[#allocation2 + $0x18] sm:$0xf]
    %v67 = vld [vmem:[#allocation2 + $0x1c] sm:$0xf]
    %v68 = vld [vmem:[#allocation2 + $0x20] sm:$0xf]
    %v69 = vld [vmem:[#allocation2 + $0x24] sm:$0xf]
    %v70 = vld [vmem:[#allocation2 + $0x28] sm:$0xf]
    %v71 = vld [vmem:[#allocation2 + $0x2c] sm:$0xf]
    %v72 = vld [vmem:[#allocation2 + $0x30] sm:$0xf]
    %v73 = vld [vmem:[#allocation2 + $0x34] sm:$0xf]
    %v74 = vld [vmem:[#allocation2 + $0x38] sm:$0xf]
    %v75 = vld [vmem:[#allocation2 + $0x3c] sm:$0xf]
    %v76 = vld [vmem:[#allocation5] sm:$0xf]
    %v77 = vld [vmem:[#allocation5 + $0x4] sm:$0xf]
    %v78 = vld [vmem:[#allocation5 + $0x8] sm:$0xf]
    %v79 = vld [vmem:[#allocation5 + $0xc] sm:$0xf]
    %v80 = vld [vmem:[#allocation5 + $0x10] sm:$0xf]
    %v81 = vld [vmem:[#allocation5 + $0x14] sm:$0xf]
    %v82 = vld [vmem:[#allocation5 + $0x18] sm:$0xf]
    %v83 = vld [vmem:[#allocation5 + $0x1c] sm:$0xf]
    %v84 = vld [vmem:[#allocation5 + $0x20] sm:$0xf]
    %v85 = vld [vmem:[#allocation5 + $0x24] sm:$0xf]
    %v86 = vld [vmem:[#allocation5 + $0x28] sm:$0xf]
    %v87 = vld [vmem:[#allocation5 + $0x2c] sm:$0xf]
    %v88 = vld [vmem:[#allocation5 + $0x30] sm:$0xf]
    %v89 = vld [vmem:[#allocation5 + $0x34] sm:$0xf]
    %v90 = vld [vmem:[#allocation5 + $0x38] sm:$0xf]
    %v91 = vld [vmem:[#allocation5 + $0x3c] sm:$0xf]
    %v108 = vunpack.c.l.b16 %v60
    %v109 = vunpack.c.l.b16 %v61
    %v110 = vunpack.c.l.b16 %v62
    %v111 = vunpack.c.l.b16 %v63
    %v112 = vunpack.c.l.b16 %v64
    %v113 = vunpack.c.l.b16 %v65
    %v114 = vunpack.c.l.b16 %v66
    %v115 = vunpack.c.l.b16 %v67
    %v116 = vunpack.c.l.b16 %v68
    %v117 = vunpack.c.l.b16 %v69
    %v118 = vunpack.c.l.b16 %v70
    %v119 = vunpack.c.l.b16 %v71
    %v120 = vunpack.c.l.b16 %v72
    %v121 = vunpack.c.l.b16 %v73
    %v122 = vunpack.c.l.b16 %v74
    %v123 = vunpack.c.l.b16 %v75
    %v124 = vpack.c.b16 %v109, %v108
    %v125 = vpack.c.b16 %v111, %v110
    %v126 = vpack.c.b16 %v113, %v112
    %v127 = vpack.c.b16 %v115, %v114
    %v128 = vpack.c.b16 %v117, %v116
    %v129 = vpack.c.b16 %v119, %v118
    %v130 = vpack.c.b16 %v121, %v120
    %v131 = vpack.c.b16 %v123, %v122
    %v156 = vunpack.c.l.b16 %v76
    %v157 = vunpack.c.l.b16 %v77
    %v158 = vunpack.c.l.b16 %v78
    %v159 = vunpack.c.l.b16 %v79
    %v160 = vunpack.c.l.b16 %v80
    %v161 = vunpack.c.l.b16 %v81
    %v162 = vunpack.c.l.b16 %v82
    %v163 = vunpack.c.l.b16 %v83
    %v164 = vunpack.c.l.b16 %v84
    %v165 = vunpack.c.l.b16 %v85
    %v166 = vunpack.c.l.b16 %v86
    %v167 = vunpack.c.l.b16 %v87
    %v168 = vunpack.c.l.b16 %v88
    %v169 = vunpack.c.l.b16 %v89
    %v170 = vunpack.c.l.b16 %v90
    %v171 = vunpack.c.l.b16 %v91
    %v172 = vpack.c.b16 %v157, %v156
    %v173 = vpack.c.b16 %v159, %v158
    %v174 = vpack.c.b16 %v161, %v160
    %v175 = vpack.c.b16 %v163, %v162
    %v176 = vpack.c.b16 %v165, %v164
    %v177 = vpack.c.b16 %v167, %v166
    %v178 = vpack.c.b16 %v169, %v168
    %v179 = vpack.c.b16 %v171, %v170
    %188 = vmatprep.subr.bf16.mxu0 0
    %189 = vmatpush1.bf16.msra.mxu0 %v172
    %190 = vmatprep.subr.bf16.mxu0 0
    %191 = vmatpush1.bf16.msra.mxu0 %v173
    %192 = vmatprep.subr.bf16.mxu0 0
    %193 = vmatpush1.bf16.msra.mxu0 %v174
    %194 = vmatprep.subr.bf16.mxu0 0
    %195 = vmatpush1.bf16.msra.mxu0 %v175
    %196 = vmatprep.subr.bf16.mxu0 0
    %197 = vmatpush1.bf16.msra.mxu0 %v176
    %198 = vmatprep.subr.bf16.mxu0 0
    %199 = vmatpush1.bf16.msra.mxu0 %v177
    %200 = vmatprep.subr.bf16.mxu0 0
    %201 = vmatpush1.bf16.msra.mxu0 %v178
    %202 = vmatprep.subr.bf16.mxu0 0
    %203 = vmatpush1.bf16.msra.mxu0 %v179
    %204 = vmatprep.subr.bf16.mxu0 0
    %205 = vmatpush1.bf16.msra.mxu0 0
    %206 = vmatprep.subr.bf16.mxu0 0
    %207 = vmatpush1.bf16.msra.mxu0 0
    %208 = vmatprep.subr.bf16.mxu0 0
    %209 = vmatpush1.bf16.msra.mxu0 0
    %210 = vmatprep.subr.bf16.mxu0 0
    %211 = vmatpush1.bf16.msra.mxu0 0
    %212 = vmatprep.subr.bf16.mxu0 0
    %213 = vmatpush1.bf16.msra.mxu0 0
    %214 = vmatprep.subr.bf16.mxu0 0
    %215 = vmatpush1.bf16.msra.mxu0 0
    %216 = vmatprep.subr.bf16.mxu0 0
    %217 = vmatpush1.bf16.msra.mxu0 0
    %218 = vmatprep.subr.bf16.mxu0 0
    %219 = vmatpush1.bf16.msra.mxu0 0
    %220 = vmatprep.mubr.bf16.mxu0 0
    %221 = vmatmul.mubr.bf16.gmra.mrb[0].mxu0 %v124
    %v222 = vpop.f32.mrb[0].mxu0
    %v223 = vadd.f32 0.0, %v222
    %v224 = vpop.f32.mrb[0].mxu0
    %v225 = vpop.f32.mrb[0].mxu0
    %v226 = vadd.f32 0.0, %v225
    %v227 = vpop.f32.mrb[0].mxu0
    %228 = vmatprep.mubr.bf16.mxu0 0
    %229 = vmatmul.mubr.bf16.gmra.mrb[0].mxu0 %v125
    %v230 = vpop.f32.mrb[0].mxu0
    %v231 = vadd.f32 0.0, %v230
    %v232 = vpop.f32.mrb[0].mxu0
    %v233 = vpop.f32.mrb[0].mxu0
    %v234 = vadd.f32 0.0, %v233
    %v235 = vpop.f32.mrb[0].mxu0
    %236 = vmatprep.mubr.bf16.mxu0 0
    %237 = vmatmul.mubr.bf16.gmra.mrb[0].mxu0 %v126
    %v238 = vpop.f32.mrb[0].mxu0
    %v239 = vadd.f32 0.0, %v238
    %v240 = vpop.f32.mrb[0].mxu0
    %v241 = vpop.f32.mrb[0].mxu0
    %v242 = vadd.f32 0.0, %v241
    %v243 = vpop.f32.mrb[0].mxu0
    %244 = vmatprep.mubr.bf16.mxu0 0
    %245 = vmatmul.mubr.bf16.gmra.mrb[0].mxu0 %v127
    %v246 = vpop.f32.mrb[0].mxu0
    %v247 = vadd.f32 0.0, %v246
    %v248 = vpop.f32.mrb[0].mxu0
    %v249 = vpop.f32.mrb[0].mxu0
    %v250 = vadd.f32 0.0, %v249
    %v251 = vpop.f32.mrb[0].mxu0
    %252 = vmatprep.mubr.bf16.mxu0 0
    %253 = vmatmul.mubr.bf16.gmra.mrb[0].mxu0 %v128
    %v254 = vpop.f32.mrb[0].mxu0
    %v255 = vadd.f32 0.0, %v254
    %v256 = vpop.f32.mrb[0].mxu0
    %v257 = vpop.f32.mrb[0].mxu0
    %v258 = vadd.f32 0.0, %v257
    %v259 = vpop.f32.mrb[0].mxu0
    %260 = vmatprep.mubr.bf16.mxu0 0
    %261 = vmatmul.mubr.bf16.gmra.mrb[0].mxu0 %v129
    %v262 = vpop.f32.mrb[0].mxu0
    %v263 = vadd.f32 0.0, %v262
    %v264 = vpop.f32.mrb[0].mxu0
    %v265 = vpop.f32.mrb[0].mxu0
    %v266 = vadd.f32 0.0, %v265
    %v267 = vpop.f32.mrb[0].mxu0
    %268 = vmatprep.mubr.bf16.mxu0 0
    %269 = vmatmul.mubr.bf16.gmra.mrb[0].mxu0 %v130
    %v270 = vpop.f32.mrb[0].mxu0
    %v271 = vadd.f32 0.0, %v270
    %v272 = vpop.f32.mrb[0].mxu0
    %v273 = vpop.f32.mrb[0].mxu0
    %v274 = vadd.f32 0.0, %v273
    %v275 = vpop.f32.mrb[0].mxu0
    %276 = vmatprep.mubr.bf16.mxu0 0
    %277 = vmatmul.mubr.bf16.gmra.mrb[0].mxu0 %v131
    %v278 = vpop.f32.mrb[0].mxu0
    %v279 = vadd.f32 0.0, %v278
    %v280 = vpop.f32.mrb[0].mxu0
    %v281 = vpop.f32.mrb[0].mxu0
    %v282 = vadd.f32 0.0, %v281
    %v283 = vpop.f32.mrb[0].mxu0
    %284 = vdwg.mxu0
    %v285 = vpack.c.bf16 %v226, %v223
    %v286 = vpack.c.bf16 %v234, %v231
    %v287 = vpack.c.bf16 %v242, %v239
    %v288 = vpack.c.bf16 %v250, %v247
    %v289 = vpack.c.bf16 %v258, %v255
    %v290 = vpack.c.bf16 %v266, %v263
    %v291 = vpack.c.bf16 %v274, %v271
    %v292 = vpack.c.bf16 %v282, %v279
    %v301 = vunpack.c.l.b16 %v285
    %v302 = vunpack.c.h.b16 %v285
    %v303 = vunpack.c.l.b16 %v286
    %v304 = vunpack.c.h.b16 %v286
    %v305 = vunpack.c.l.b16 %v287
    %v306 = vunpack.c.h.b16 %v287
    %v307 = vunpack.c.l.b16 %v288
    %v308 = vunpack.c.h.b16 %v288
    %v309 = vunpack.c.l.b16 %v289
    %v310 = vunpack.c.h.b16 %v289
    %v311 = vunpack.c.l.b16 %v290
    %v312 = vunpack.c.h.b16 %v290
    %v313 = vunpack.c.l.b16 %v291
    %v314 = vunpack.c.h.b16 %v291
    %v315 = vunpack.c.l.b16 %v292
    %v316 = vunpack.c.h.b16 %v292
    %v317 = vpack.c.b16 %v301, %v301
    %v318 = vpack.c.b16 %v302, %v302
    %v319 = vpack.c.b16 %v303, %v303
    %v320 = vpack.c.b16 %v304, %v304
    %v321 = vpack.c.b16 %v305, %v305
    %v322 = vpack.c.b16 %v306, %v306
    %v323 = vpack.c.b16 %v307, %v307
    %v324 = vpack.c.b16 %v308, %v308
    %v325 = vpack.c.b16 %v309, %v309
    %v326 = vpack.c.b16 %v310, %v310
    %v327 = vpack.c.b16 %v311, %v311
    %v328 = vpack.c.b16 %v312, %v312
    %v329 = vpack.c.b16 %v313, %v313
    %v330 = vpack.c.b16 %v314, %v314
    %v331 = vpack.c.b16 %v315, %v315
    %v332 = vpack.c.b16 %v316, %v316
    %349 = vst [vmem:[#allocation8] sm:$0xf] %v317
    %350 = vst [vmem:[#allocation8 + $0x4] sm:$0xf] %v318
    %351 = vst [vmem:[#allocation8 + $0x8] sm:$0xf] %v319
    %352 = vst [vmem:[#allocation8 + $0xc] sm:$0xf] %v320
    %353 = vst [vmem:[#allocation8 + $0x10] sm:$0xf] %v321
    %354 = vst [vmem:[#allocation8 + $0x14] sm:$0xf] %v322
    %355 = vst [vmem:[#allocation8 + $0x18] sm:$0xf] %v323
    %356 = vst [vmem:[#allocation8 + $0x1c] sm:$0xf] %v324
    %357 = vst [vmem:[#allocation8 + $0x20] sm:$0xf] %v325
    %358 = vst [vmem:[#allocation8 + $0x24] sm:$0xf] %v326
    %359 = vst [vmem:[#allocation8 + $0x28] sm:$0xf] %v327
    %360 = vst [vmem:[#allocation8 + $0x2c] sm:$0xf] %v328
    %361 = vst [vmem:[#allocation8 + $0x30] sm:$0xf] %v329
    %362 = vst [vmem:[#allocation8 + $0x34] sm:$0xf] %v330
    %363 = vst [vmem:[#allocation8 + $0x38] sm:$0xf] %v331
    %364 = vst [vmem:[#allocation8 + $0x3c] sm:$0xf] %v332
    %v365 = vld [vmem:[#allocation7] sm:$0xf]
    %v366 = vld [vmem:[#allocation7 + $0x4] sm:$0xf]
    %v367 = vld [vmem:[#allocation7 + $0x8] sm:$0xf]
    %v368 = vld [vmem:[#allocation7 + $0xc] sm:$0xf]
    %v369 = vld [vmem:[#allocation7 + $0x10] sm:$0xf]
    %v370 = vld [vmem:[#allocation7 + $0x14] sm:$0xf]
    %v371 = vld [vmem:[#allocation7 + $0x18] sm:$0xf]
    %v372 = vld [vmem:[#allocation7 + $0x1c] sm:$0xf]
    %v373 = vld [vmem:[#allocation7 + $0x20] sm:$0xf]
    %v374 = vld [vmem:[#allocation7 + $0x24] sm:$0xf]
    %v375 = vld [vmem:[#allocation7 + $0x28] sm:$0xf]
    %v376 = vld [vmem:[#allocation7 + $0x2c] sm:$0xf]
    %v377 = vld [vmem:[#allocation7 + $0x30] sm:$0xf]
    %v378 = vld [vmem:[#allocation7 + $0x34] sm:$0xf]
    %v379 = vld [vmem:[#allocation7 + $0x38] sm:$0xf]
    %v380 = vld [vmem:[#allocation7 + $0x3c] sm:$0xf]
    %v397 = vunpack.c.l.b16 %v365
    %v398 = vunpack.c.l.b16 %v366
    %v399 = vunpack.c.l.b16 %v367
    %v400 = vunpack.c.l.b16 %v368
    %v401 = vunpack.c.l.b16 %v369
    %v402 = vunpack.c.l.b16 %v370
    %v403 = vunpack.c.l.b16 %v371
    %v404 = vunpack.c.l.b16 %v372
    %v405 = vunpack.c.l.b16 %v373
    %v406 = vunpack.c.l.b16 %v374
    %v407 = vunpack.c.l.b16 %v375
    %v408 = vunpack.c.l.b16 %v376
    %v409 = vunpack.c.l.b16 %v377
    %v410 = vunpack.c.l.b16 %v378
    %v411 = vunpack.c.l.b16 %v379
    %v412 = vunpack.c.l.b16 %v380
    %v413 = vpack.c.b16 %v398, %v397
    %v414 = vpack.c.b16 %v400, %v399
    %v415 = vpack.c.b16 %v402, %v401
    %v416 = vpack.c.b16 %v404, %v403
    %v417 = vpack.c.b16 %v406, %v405
    %v418 = vpack.c.b16 %v408, %v407
    %v419 = vpack.c.b16 %v410, %v409
    %v420 = vpack.c.b16 %v412, %v411
    %429 = vmatprep.subr.bf16.mxu0 0
    %430 = vmatpush1.bf16.msra.mxu0 %v413
    %431 = vmatprep.subr.bf16.mxu0 0
    %432 = vmatpush1.bf16.msra.mxu0 %v414
    %433 = vmatprep.subr.bf16.mxu0 0
    %434 = vmatpush1.bf16.msra.mxu0 %v415
    %435 = vmatprep.subr.bf16.mxu0 0
    %436 = vmatpush1.bf16.msra.mxu0 %v416
    %437 = vmatprep.subr.bf16.mxu0 0
    %438 = vmatpush1.bf16.msra.mxu0 %v417
    %439 = vmatprep.subr.bf16.mxu0 0
    %440 = vmatpush1.bf16.msra.mxu0 %v418
    %441 = vmatprep.subr.bf16.mxu0 0
    %442 = vmatpush1.bf16.msra.mxu0 %v419
    %443 = vmatprep.subr.bf16.mxu0 0
    %444 = vmatpush1.bf16.msra.mxu0 %v420
    %445 = vmatprep.subr.bf16.mxu0 0
    %446 = vmatpush1.bf16.msra.mxu0 0
    %447 = vmatprep.subr.bf16.mxu0 0
    %448 = vmatpush1.bf16.msra.mxu0 0
    %449 = vmatprep.subr.bf16.mxu0 0
    %450 = vmatpush1.bf16.msra.mxu0 0
    %451 = vmatprep.subr.bf16.mxu0 0
    %452 = vmatpush1.bf16.msra.mxu0 0
    %453 = vmatprep.subr.bf16.mxu0 0
    %454 = vmatpush1.bf16.msra.mxu0 0
    %455 = vmatprep.subr.bf16.mxu0 0
    %456 = vmatpush1.bf16.msra.mxu0 0
    %457 = vmatprep.subr.bf16.mxu0 0
    %458 = vmatpush1.bf16.msra.mxu0 0
    %459 = vmatprep.subr.bf16.mxu0 0
    %460 = vmatpush1.bf16.msra.mxu0 0
    %461 = vmatprep.mubr.bf16.mxu0 0
    %462 = vmatmul.mubr.bf16.gmra.mrb[0].mxu0 %v124
    %v463 = vpop.f32.mrb[0].mxu0
    %v464 = vadd.f32 0.0, %v463
    %v465 = vpop.f32.mrb[0].mxu0
    %v466 = vpop.f32.mrb[0].mxu0
    %v467 = vadd.f32 0.0, %v466
    %v468 = vpop.f32.mrb[0].mxu0
    %469 = vmatprep.mubr.bf16.mxu0 0
    %470 = vmatmul.mubr.bf16.gmra.mrb[0].mxu0 %v125
    %v471 = vpop.f32.mrb[0].mxu0
    %v472 = vadd.f32 0.0, %v471
    %v473 = vpop.f32.mrb[0].mxu0
    %v474 = vpop.f32.mrb[0].mxu0
    %v475 = vadd.f32 0.0, %v474
    %v476 = vpop.f32.mrb[0].mxu0
    %477 = vmatprep.mubr.bf16.mxu0 0
    %478 = vmatmul.mubr.bf16.gmra.mrb[0].mxu0 %v126
    %v479 = vpop.f32.mrb[0].mxu0
    %v480 = vadd.f32 0.0, %v479
    %v481 = vpop.f32.mrb[0].mxu0
    %v482 = vpop.f32.mrb[0].mxu0
    %v483 = vadd.f32 0.0, %v482
    %v484 = vpop.f32.mrb[0].mxu0
    %485 = vmatprep.mubr.bf16.mxu0 0
    %486 = vmatmul.mubr.bf16.gmra.mrb[0].mxu0 %v127
    %v487 = vpop.f32.mrb[0].mxu0
    %v488 = vadd.f32 0.0, %v487
    %v489 = vpop.f32.mrb[0].mxu0
    %v490 = vpop.f32.mrb[0].mxu0
    %v491 = vadd.f32 0.0, %v490
    %v492 = vpop.f32.mrb[0].mxu0
    %493 = vmatprep.mubr.bf16.mxu0 0
    %494 = vmatmul.mubr.bf16.gmra.mrb[0].mxu0 %v128
    %v495 = vpop.f32.mrb[0].mxu0
    %v496 = vadd.f32 0.0, %v495
    %v497 = vpop.f32.mrb[0].mxu0
    %v498 = vpop.f32.mrb[0].mxu0
    %v499 = vadd.f32 0.0, %v498
    %v500 = vpop.f32.mrb[0].mxu0
    %501 = vmatprep.mubr.bf16.mxu0 0
    %502 = vmatmul.mubr.bf16.gmra.mrb[0].mxu0 %v129
    %v503 = vpop.f32.mrb[0].mxu0
    %v504 = vadd.f32 0.0, %v503
    %v505 = vpop.f32.mrb[0].mxu0
    %v506 = vpop.f32.mrb[0].mxu0
    %v507 = vadd.f32 0.0, %v506
    %v508 = vpop.f32.mrb[0].mxu0
    %509 = vmatprep.mubr.bf16.mxu0 0
    %510 = vmatmul.mubr.bf16.gmra.mrb[0].mxu0 %v130
    %v511 = vpop.f32.mrb[0].mxu0
    %v512 = vadd.f32 0.0, %v511
    %v513 = vpop.f32.mrb[0].mxu0
    %v514 = vpop.f32.mrb[0].mxu0
    %v515 = vadd.f32 0.0, %v514
    %v516 = vpop.f32.mrb[0].mxu0
    %517 = vmatprep.mubr.bf16.mxu0 0
    %518 = vmatmul.mubr.bf16.gmra.mrb[0].mxu0 %v131
    %v519 = vpop.f32.mrb[0].mxu0
    %v520 = vadd.f32 0.0, %v519
    %v521 = vpop.f32.mrb[0].mxu0
    %v522 = vpop.f32.mrb[0].mxu0
    %v523 = vadd.f32 0.0, %v522
    %v524 = vpop.f32.mrb[0].mxu0
    %525 = vdwg.mxu0
    %526 = vst [vmem:[#allocation9] sm:$0xff] %v464
    %527 = vst [vmem:[#allocation9 + $0x8] sm:$0xff] %v467
    %528 = vst [vmem:[#allocation9 + $0x10] sm:$0xff] %v472
    %529 = vst [vmem:[#allocation9 + $0x18] sm:$0xff] %v475
    %530 = vst [vmem:[#allocation9 + $0x20] sm:$0xff] %v480
    %531 = vst [vmem:[#allocation9 + $0x28] sm:$0xff] %v483
    %532 = vst [vmem:[#allocation9 + $0x30] sm:$0xff] %v488
    %533 = vst [vmem:[#allocation9 + $0x38] sm:$0xff] %v491
    %534 = vst [vmem:[#allocation9 + $0x40] sm:$0xff] %v496
    %535 = vst [vmem:[#allocation9 + $0x48] sm:$0xff] %v499
    %536 = vst [vmem:[#allocation9 + $0x50] sm:$0xff] %v504
    %537 = vst [vmem:[#allocation9 + $0x58] sm:$0xff] %v507
    %538 = vst [vmem:[#allocation9 + $0x60] sm:$0xff] %v512
    %539 = vst [vmem:[#allocation9 + $0x68] sm:$0xff] %v515
    %540 = vst [vmem:[#allocation9 + $0x70] sm:$0xff] %v520
    %541 = vst [vmem:[#allocation9 + $0x78] sm:$0xff] %v523
    // Predicated region
    $region26: #{tpu_custom_call.1} parent=1 // pred_check
      _
    $region27: #{tpu_custom_call.1} parent=1 // pred_check_branch
      %543 = sbr.rel (0) target = $region29
    $region28: #{tpu_custom_call.1} parent=1 // pred_region
      %s545 = ssub.s32 1024, 1024
      %546 = vsyncadd [#allocation4], %s545
      %s547 = sshll.u32 [#allocation8], 4
      %s548 = int_to_ptr.vmem [resolvable:$true] %s547
      %553 = dma.vmem_to_hbm [thread:$0]  %s548, 1024, %s3, [#allocation4], 64, 64, 4
    $region29: #{tpu_custom_call.1} parent=1 // pred_fallthru
      _
    // Predicated region
    $region30: #{tpu_custom_call.1} parent=1 // pred_check
      _
    $region31: #{tpu_custom_call.1} parent=1 // pred_check_branch
      %555 = sbr.rel (0) target = $region33
    $region32: #{tpu_custom_call.1} parent=1 // pred_region
      %s557 = ssub.s32 2048, 2048
      %558 = vsyncadd [#allocation10], %s557
      %s559 = sshll.u32 [#allocation9], 4
      %s560 = int_to_ptr.vmem [resolvable:$true] %s559
      %565 = dma.vmem_to_hbm [thread:$0]  %s560, 2048, %s4, [#allocation10], 128, 128, 8
    $region33: #{tpu_custom_call.1} parent=1 // pred_fallthru
      _
    // Predicated region
    $region34: #{tpu_custom_call.1} parent=1 // pred_check
      _
    $region35: #{tpu_custom_call.1} parent=1 // pred_check_branch
      %567 = sbr.rel (0) target = $region37
    $region36: #{tpu_custom_call.1} parent=1 // pred_region
      %568 = dma.done [#allocation4], 1024
    $region37: #{tpu_custom_call.1} parent=1 // pred_fallthru
      _
    // Predicated region
    $region38: #{tpu_custom_call.1} parent=1 // pred_check
      _
    $region39: #{tpu_custom_call.1} parent=1 // pred_check_branch
      %570 = sbr.rel (0) target = $region41
    $region40: #{tpu_custom_call.1} parent=1 // pred_region
      %571 = dma.done [#allocation10], 2048
    $region41: #{tpu_custom_call.1} parent=1 // pred_fallthru
      _
    %572 = vsyncpa [#allocation3], 1
    %573 = vsyncpa [#allocation6], 1
    %574 = vsyncpa [#allocation4], 1
    %575 = vsyncpa [#allocation10], 1

</llo_original>
